<compile_context>
chip_gen: v7x
topology: tpu7x:2x2x1
jax: 0.10.0
libtpu: 0.0.40
codegen_flags: <defaults>
</compile_context>

<pallas_src>
import functools

import numpy as np
import jax
import jax.numpy as jnp
from jax.experimental import pallas as pl
from jax.experimental.pallas import tpu as pltpu


def _torch_linspace_long(start, end, steps):
    """Bit-exact reproduction of torch.linspace(start, end, steps).long().

    torch (CPU) computes linspace in float32 with a two-sided formula
    (start + i*step for the first half, end - (steps-1-i)*step for the
    second half); .long() truncates toward zero.

    NOTE: some torch builds/devices (e.g. CUDA) use the one-sided formula and
    a 1-ulp difference can shift a truncated index for certain T; validate
    against the production torch build if T/alpha differ from the defaults.
    """
    if steps <= 0:
        return []
    if steps == 1:
        return [int(np.float32(start))]
    start32 = np.float32(start)
    end32 = np.float32(end)
    step = (end32 - start32) / np.float32(steps - 1)
    halfway = steps // 2
    vals = []
    for i in range(steps):
        if i < halfway:
            v = start32 + np.float32(i) * step
        else:
            v = end32 - np.float32(steps - 1 - i) * step
        vals.append(int(v))  # truncation toward zero (values are >= 0 here)
    return vals


# ---------------------------------------------------------------------------
# Kernels: gridless, zero-VMEM HBM->HBM DMA gather.
# ---------------------------------------------------------------------------

def _make_uniform_gather_kernel(start, size, stride):
    """ONE strided DMA descriptor: rows start, start+stride, ... (size rows)."""

    def kernel(x_hbm, o_hbm, sem):
        cp = pltpu.make_async_copy(
            x_hbm.at[:, pl.ds(start, size, stride=stride), :],  # (C, size, H*W)
            o_hbm,
            sem,
        )
        cp.start()
        cp.wait()

    return kernel


def _make_per_frame_gather_kernel(idx):
    """Fallback: one DMA per gathered frame, all sharing ONE DMA semaphore.

    All copies are issued back-to-back (overlapped on the DMA engine) and then
    waited; every copy moves the same number of bytes, so each .wait() on the
    shared semaphore consumes exactly one completed copy.
    """

    def kernel(x_hbm, o_hbm, sem):
        copies = [
            pltpu.make_async_copy(
                x_hbm.at[:, pl.ds(t, 1), :],   # (C, 1, H*W) strided slab in HBM
                o_hbm.at[:, pl.ds(i, 1), :],
                sem,                            # shared semaphore (review item 2)
            )
            for i, t in enumerate(idx)
        ]
        for cp in copies:   # issue all DMAs -> overlapped on the DMA engine
            cp.start()
        for cp in copies:
            cp.wait()

    return kernel


def _hbm_gather_call(kernel, out_shape_dtype, frames_flat):
    return pl.pallas_call(
        kernel,
        out_shape=out_shape_dtype,
        in_specs=[pl.BlockSpec(memory_space=pl.ANY)],   # raw HBM ref, no auto-DMA
        out_specs=pl.BlockSpec(memory_space=pl.ANY),    # written directly by DMA
        scratch_shapes=[pltpu.SemaphoreType.DMA(())],   # ONE shared DMA semaphore
    )(frames_flat)


@functools.lru_cache(maxsize=None)
def _strided_ref_dma_supported() -> bool:
    """One-time probe: does this Mosaic build accept a strided ref slice as a
    DMA source (pl.ds(..., stride>1) on an HBM ref)?  Runs a tiny copy and
    checks the bytes landed correctly; any lowering/compile rejection (e.g.
    "Strided slices of references are unsupported") selects the per-frame
    fallback instead."""
    try:
        x = np.arange(2 * 8 * 128, dtype=np.float32).reshape(2, 8, 128)
        out = _hbm_gather_call(
            _make_uniform_gather_kernel(1, 2, 2),          # rows 1 and 3
            jax.ShapeDtypeStruct((2, 2, 128), jnp.float32),
            jnp.asarray(x),
        )
        out = np.asarray(jax.block_until_ready(out))
        return bool(np.array_equal(out, x[:, 1:4:2, :]))
    except Exception:
        return False


# ---------------------------------------------------------------------------
# Wrapper (PackPathway.forward equivalent).
# ---------------------------------------------------------------------------

def pack_pathway(frames: jax.Array, alpha: int = 4, *,
                 min_pallas_bytes: int = 256 * 1024,
                 min_run_bytes: int = 512):
    """Returns [slow_pathway, fast_pathway] like PackPathway.forward."""
    C, T, H, W = frames.shape
    n_slow = T // alpha
    idx = _torch_linspace_long(0, T - 1, n_slow)

    fast = frames  # identity pathway (same array), matching PyTorch

    if n_slow == 0:
        # torch.index_select with an empty index tensor -> empty temporal dim.
        return [jnp.zeros((C, 0, H, W), dtype=frames.dtype), fast]

    hw = H * W
    itemsize = frames.dtype.itemsize
    slab_bytes = C * n_slow * hw * itemsize   # bytes gathered (one direction)
    run_bytes = hw * itemsize                 # contiguous run per (channel, frame)

    # Tiny clips / short contiguous runs: custom-call launch + DMA descriptor
    # overhead dwarfs the copy, and short strided runs waste HBM bursts ->
    # let XLA's fused gather handle it (review items 4 & 5).
    if slab_bytes < min_pallas_bytes or run_bytes < min_run_bytes:
        slow = jnp.take(frames, jnp.asarray(idx, dtype=jnp.int32), axis=1)
        return [slow, fast]

    frames_flat = frames.reshape(C, T, hw)  # free view; dense rows of H*W

    deltas = [b - a for a, b in zip(idx[:-1], idx[1:])]
    uniform = n_slow > 1 and len(set(deltas)) == 1 and deltas[0] >= 1

    if uniform and _strided_ref_dma_supported():
        # ONE descriptor + ONE wait for the whole gather (review item 1).
        kernel = _make_uniform_gather_kernel(idx[0], n_slow, deltas[0])
    else:
        # Non-uniform truncated indices (e.g. T=32), n_slow == 1, or strided
        # ref DMA unsupported: per-frame descriptors, shared semaphore.
        kernel = _make_per_frame_gather_kernel(idx)

    slow_flat = _hbm_gather_call(
        kernel, jax.ShapeDtypeStruct((C, n_slow, hw), frames.dtype), frames_flat)

    slow = slow_flat.reshape(C, n_slow, H, W)
    return [slow, fast]


if __name__ == "__main__":
    k1, k2 = jax.random.split(jax.random.PRNGKey(0))

    def ref_slow(frames_np, alpha=4):
        T = frames_np.shape[1]
        return frames_np[:, _torch_linspace_long(0, T - 1, T // alpha), :, :]

    # --- Case 1: uniform linspace indices (T=16 -> idx [0,5,10,15]). --------
    C, T, H, W = 3, 16, 16, 16
    frames = jax.random.normal(k1, (C, T, H, W), dtype=jnp.float32)
    frames_np = np.asarray(frames)
    # Force the Pallas DMA-gather path (the default dispatch would route this
    # ~12 KB slab to the jnp.take fallback, per the review).
    slow, fast = pack_pathway(frames, min_pallas_bytes=0, min_run_bytes=0)
    slow = jax.block_until_ready(slow)
    fast = jax.block_until_ready(fast)
    assert slow.shape == (C, T // 4, H, W) and fast.shape == (C, T, H, W)
    np.testing.assert_array_equal(np.asarray(slow), ref_slow(frames_np))
    np.testing.assert_array_equal(np.asarray(fast), frames_np)

    # --- Case 2: non-uniform truncated indices (T=32 -> [0,4,8,13,...]). ----
    T2 = 32
    frames2 = jax.random.normal(k2, (C, T2, H, W), dtype=jnp.float32)
    frames2_np = np.asarray(frames2)
    slow2, fast2 = pack_pathway(frames2, min_pallas_bytes=0, min_run_bytes=0)
    slow2 = jax.block_until_ready(slow2)
    assert slow2.shape == (C, T2 // 4, H, W)
    np.testing.assert_array_equal(np.asarray(slow2), ref_slow(frames2_np))
    np.testing.assert_array_equal(np.asarray(fast2), frames2_np)

    # --- Case 3: default dispatch -> tiny-input jnp.take fallback. ----------
    slow3, fast3 = pack_pathway(frames)   # default thresholds: ~12 KB slab
    slow3 = jax.block_until_ready(slow3)
    np.testing.assert_array_equal(np.asarray(slow3), ref_slow(frames_np))
    np.testing.assert_array_equal(np.asarray(fast3), frames_np)

    # --- Case 4: degenerate T < alpha -> empty slow pathway, no kernel. -----
    tiny = jax.random.normal(k1, (C, 3, H, W), dtype=jnp.float32)
    slow_tiny, fast_tiny = pack_pathway(tiny)
    assert slow_tiny.shape == (C, 0, H, W)
    assert fast_tiny.shape == (C, 3, H, W)

    print("KERNEL_OK")
</pallas_src>

<mosaic_0001>
module attributes {stable_mosaic.version = 11 : i64} {
  func.func @kernel(%arg0: memref<3x16x256xf32, #tpu.memory_space<any>>, %arg1: memref<3x4x256xf32, #tpu.memory_space<any>>, %arg2: memref<!tpu.dma_semaphore, #tpu.memory_space<semaphore_mem>>) attributes {dimension_semantics = [], scalar_prefetch = 0 : i64, scratch_operands = 1 : i64, tpu.core_type = #tpu.core_type<tc>} {
    %c0_i32 = arith.constant 0 : i32
    %c0_i32_0 = arith.constant 0 : i32
    %c0_i32_1 = arith.constant 0 : i32
    %0 = tpu.memref_slice %arg0[%c0_i32, %c0_i32_0, %c0_i32_1] : memref<3x16x256xf32, #tpu.memory_space<any>> -> memref<3x1x256xf32, #tpu.memory_space<any>>
    %c0_i32_2 = arith.constant 0 : i32
    %c0_i32_3 = arith.constant 0 : i32
    %c0_i32_4 = arith.constant 0 : i32
    %1 = tpu.memref_slice %arg1[%c0_i32_2, %c0_i32_3, %c0_i32_4] : memref<3x4x256xf32, #tpu.memory_space<any>> -> memref<3x1x256xf32, #tpu.memory_space<any>>
    tpu.enqueue_dma source(%0 : memref<3x1x256xf32, #tpu.memory_space<any>>) target(%1 : memref<3x1x256xf32, #tpu.memory_space<any>>) target_semaphore(%arg2 : memref<!tpu.dma_semaphore, #tpu.memory_space<semaphore_mem>>)
    %c0_i32_5 = arith.constant 0 : i32
    %c5_i32 = arith.constant 5 : i32
    %c0_i32_6 = arith.constant 0 : i32
    %2 = tpu.memref_slice %arg0[%c0_i32_5, %c5_i32, %c0_i32_6] : memref<3x16x256xf32, #tpu.memory_space<any>> -> memref<3x1x256xf32, #tpu.memory_space<any>>
    %c0_i32_7 = arith.constant 0 : i32
    %c1_i32 = arith.constant 1 : i32
    %c0_i32_8 = arith.constant 0 : i32
    %3 = tpu.memref_slice %arg1[%c0_i32_7, %c1_i32, %c0_i32_8] : memref<3x4x256xf32, #tpu.memory_space<any>> -> memref<3x1x256xf32, #tpu.memory_space<any>>
    tpu.enqueue_dma source(%2 : memref<3x1x256xf32, #tpu.memory_space<any>>) target(%3 : memref<3x1x256xf32, #tpu.memory_space<any>>) target_semaphore(%arg2 : memref<!tpu.dma_semaphore, #tpu.memory_space<semaphore_mem>>)
    %c0_i32_9 = arith.constant 0 : i32
    %c10_i32 = arith.constant 10 : i32
    %c0_i32_10 = arith.constant 0 : i32
    %4 = tpu.memref_slice %arg0[%c0_i32_9, %c10_i32, %c0_i32_10] : memref<3x16x256xf32, #tpu.memory_space<any>> -> memref<3x1x256xf32, #tpu.memory_space<any>>
    %c0_i32_11 = arith.constant 0 : i32
    %c2_i32 = arith.constant 2 : i32
    %c0_i32_12 = arith.constant 0 : i32
    %5 = tpu.memref_slice %arg1[%c0_i32_11, %c2_i32, %c0_i32_12] : memref<3x4x256xf32, #tpu.memory_space<any>> -> memref<3x1x256xf32, #tpu.memory_space<any>>
    tpu.enqueue_dma source(%4 : memref<3x1x256xf32, #tpu.memory_space<any>>) target(%5 : memref<3x1x256xf32, #tpu.memory_space<any>>) target_semaphore(%arg2 : memref<!tpu.dma_semaphore, #tpu.memory_space<semaphore_mem>>)
    %c0_i32_13 = arith.constant 0 : i32
    %c15_i32 = arith.constant 15 : i32
    %c0_i32_14 = arith.constant 0 : i32
    %6 = tpu.memref_slice %arg0[%c0_i32_13, %c15_i32, %c0_i32_14] : memref<3x16x256xf32, #tpu.memory_space<any>> -> memref<3x1x256xf32, #tpu.memory_space<any>>
    %c0_i32_15 = arith.constant 0 : i32
    %c3_i32 = arith.constant 3 : i32
    %c0_i32_16 = arith.constant 0 : i32
    %7 = tpu.memref_slice %arg1[%c0_i32_15, %c3_i32, %c0_i32_16] : memref<3x4x256xf32, #tpu.memory_space<any>> -> memref<3x1x256xf32, #tpu.memory_space<any>>
    tpu.enqueue_dma source(%6 : memref<3x1x256xf32, #tpu.memory_space<any>>) target(%7 : memref<3x1x256xf32, #tpu.memory_space<any>>) target_semaphore(%arg2 : memref<!tpu.dma_semaphore, #tpu.memory_space<semaphore_mem>>)
    %c0_i32_17 = arith.constant 0 : i32
    %c0_i32_18 = arith.constant 0 : i32
    %c0_i32_19 = arith.constant 0 : i32
    %8 = tpu.memref_slice %arg0[%c0_i32_17, %c0_i32_18, %c0_i32_19] : memref<3x16x256xf32, #tpu.memory_space<any>> -> memref<3x1x256xf32, #tpu.memory_space<any>>
    %c0_i32_20 = arith.constant 0 : i32
    %c0_i32_21 = arith.constant 0 : i32
    %c0_i32_22 = arith.constant 0 : i32
    %9 = tpu.memref_slice %arg1[%c0_i32_20, %c0_i32_21, %c0_i32_22] : memref<3x4x256xf32, #tpu.memory_space<any>> -> memref<3x1x256xf32, #tpu.memory_space<any>>
    tpu.wait_dma2 semaphore(%arg2 : memref<!tpu.dma_semaphore, #tpu.memory_space<semaphore_mem>>) src(%8 : memref<3x1x256xf32, #tpu.memory_space<any>>) dst(%9 : memref<3x1x256xf32, #tpu.memory_space<any>>)
    %c0_i32_23 = arith.constant 0 : i32
    %c5_i32_24 = arith.constant 5 : i32
    %c0_i32_25 = arith.constant 0 : i32
    %10 = tpu.memref_slice %arg0[%c0_i32_23, %c5_i32_24, %c0_i32_25] : memref<3x16x256xf32, #tpu.memory_space<any>> -> memref<3x1x256xf32, #tpu.memory_space<any>>
    %c0_i32_26 = arith.constant 0 : i32
    %c1_i32_27 = arith.constant 1 : i32
    %c0_i32_28 = arith.constant 0 : i32
    %11 = tpu.memref_slice %arg1[%c0_i32_26, %c1_i32_27, %c0_i32_28] : memref<3x4x256xf32, #tpu.memory_space<any>> -> memref<3x1x256xf32, #tpu.memory_space<any>>
    tpu.wait_dma2 semaphore(%arg2 : memref<!tpu.dma_semaphore, #tpu.memory_space<semaphore_mem>>) src(%10 : memref<3x1x256xf32, #tpu.memory_space<any>>) dst(%11 : memref<3x1x256xf32, #tpu.memory_space<any>>)
    %c0_i32_29 = arith.constant 0 : i32
    %c10_i32_30 = arith.constant 10 : i32
    %c0_i32_31 = arith.constant 0 : i32
    %12 = tpu.memref_slice %arg0[%c0_i32_29, %c10_i32_30, %c0_i32_31] : memref<3x16x256xf32, #tpu.memory_space<any>> -> memref<3x1x256xf32, #tpu.memory_space<any>>
    %c0_i32_32 = arith.constant 0 : i32
    %c2_i32_33 = arith.constant 2 : i32
    %c0_i32_34 = arith.constant 0 : i32
    %13 = tpu.memref_slice %arg1[%c0_i32_32, %c2_i32_33, %c0_i32_34] : memref<3x4x256xf32, #tpu.memory_space<any>> -> memref<3x1x256xf32, #tpu.memory_space<any>>
    tpu.wait_dma2 semaphore(%arg2 : memref<!tpu.dma_semaphore, #tpu.memory_space<semaphore_mem>>) src(%12 : memref<3x1x256xf32, #tpu.memory_space<any>>) dst(%13 : memref<3x1x256xf32, #tpu.memory_space<any>>)
    %c0_i32_35 = arith.constant 0 : i32
    %c15_i32_36 = arith.constant 15 : i32
    %c0_i32_37 = arith.constant 0 : i32
    %14 = tpu.memref_slice %arg0[%c0_i32_35, %c15_i32_36, %c0_i32_37] : memref<3x16x256xf32, #tpu.memory_space<any>> -> memref<3x1x256xf32, #tpu.memory_space<any>>
    %c0_i32_38 = arith.constant 0 : i32
    %c3_i32_39 = arith.constant 3 : i32
    %c0_i32_40 = arith.constant 0 : i32
    %15 = tpu.memref_slice %arg1[%c0_i32_38, %c3_i32_39, %c0_i32_40] : memref<3x4x256xf32, #tpu.memory_space<any>> -> memref<3x1x256xf32, #tpu.memory_space<any>>
    tpu.wait_dma2 semaphore(%arg2 : memref<!tpu.dma_semaphore, #tpu.memory_space<semaphore_mem>>) src(%14 : memref<3x1x256xf32, #tpu.memory_space<any>>) dst(%15 : memref<3x1x256xf32, #tpu.memory_space<any>>)
    return
  }
}

</mosaic_0001>

<llo_original>
// kernel: tpu_custom_call.1
$region0: #{tpu_custom_call.1}
  #allocation0 [shape = 'u32[]', space=smem, size = 0x4, offset = 0x4, fixed_abs, tag = 'smem constant byte address 0x4 - core index']
  #allocation1 [shape = 'u32[144,128]{1,0:T(1,128)}', space=vmem, size = 0x12000, scoped, tag = 'internal scratch']
  #allocation2 [shape = 's32[1]{0}', space=sflag, size = 0x4, scoped, tag = 'scratch operand']
  #allocation3 [shape = 's32[]', space=sflag, size = 0x4, offset = 0, fixed_abs, tag = 'sflag constant byte address 0x0 - dummy sync flag']
  #allocation5 [shape = 's32[]', space=sflag, size = 0x4, offset = 0, fixed_abs, tag = 'sflag constant byte address 0x0 - dummy sync flag']
  #allocation7 [shape = 's32[]', space=sflag, size = 0x4, offset = 0, fixed_abs, tag = 'sflag constant byte address 0x0 - dummy sync flag']
  #allocation9 [shape = 's32[]', space=sflag, size = 0x4, offset = 0, fixed_abs, tag = 'sflag constant byte address 0x0 - dummy sync flag']
  %s0 = inlined_call_operand.hbm [shape: f32[3,16,256], index: 0, kind: input, shape index: {}]
  %s1 = inlined_call_operand.hbm [shape: f32[3,4,256], index: 1, kind: output, shape index: {}]
  %s2 = sld [smem:[#allocation0]]
  $region2: #{tpu_custom_call.1} parent=0
    _
  %s4 = ssub.s32 1, %s2
  %s5 = scalar_select 0, %s4, %s2
  $region1: #{tpu_custom_call.1} parent=0
    #allocation4 [shape = 'u32[6]{0}', space=smem, size = 0x18, scoped, tag = 'DMA stride descriptor']
    #allocation6 [shape = 'u32[6]{0}', space=smem, size = 0x18, scoped, tag = 'DMA stride descriptor']
    #allocation8 [shape = 'u32[6]{0}', space=smem, size = 0x18, scoped, tag = 'DMA stride descriptor']
    #allocation10 [shape = 'u32[6]{0}', space=smem, size = 0x18, scoped, tag = 'DMA stride descriptor']
    %s7 = sshll.u32 1, 14
    %s8 = sxor.u32 4294967295, %s7
    %s11 = sshll.u32 3, 24
    %s12 = sxor.u32 4294967295, %s11
    %s13 = sand.u32 0, %s12
    %s15 = sor.u32 %s13, 0
    %18 = sst [smem:[#allocation4]] 512
    %s19 = scalar_lea.smem [#allocation4], 1
    %20 = sst [smem:[%s19]] 128
    %s21 = scalar_lea.smem [#allocation4], 2
    %22 = sst [smem:[%s21]] 2
    %s23 = scalar_lea.smem [#allocation4], 3
    %24 = sst [smem:[%s23]] 128
    %s25 = scalar_lea.smem [#allocation4], 4
    %26 = sst [smem:[%s25]] 64
    %s27 = scalar_lea.smem [#allocation4], 5
    %28 = sst [smem:[%s27]] 1
    %30 = dma.general %s0, 96, %s1, [#allocation2], [#allocation3], [#allocation4], %s15, 0
    %s31 = scalar_lea.hbm %s0, 80
    %s32 = scalar_lea.hbm %s1, 16
    %s34 = sshll.u32 1, 14
    %s35 = sxor.u32 4294967295, %s34
    %s38 = sshll.u32 3, 24
    %s39 = sxor.u32 4294967295, %s38
    %s40 = sand.u32 0, %s39
    %s42 = sor.u32 %s40, 0
    %45 = sst [smem:[#allocation6]] 512
    %s46 = scalar_lea.smem [#allocation6], 1
    %47 = sst [smem:[%s46]] 128
    %s48 = scalar_lea.smem [#allocation6], 2
    %49 = sst [smem:[%s48]] 2
    %s50 = scalar_lea.smem [#allocation6], 3
    %51 = sst [smem:[%s50]] 128
    %s52 = scalar_lea.smem [#allocation6], 4
    %53 = sst [smem:[%s52]] 64
    %s54 = scalar_lea.smem [#allocation6], 5
    %55 = sst [smem:[%s54]] 1
    %57 = dma.general %s31, 96, %s32, [#allocation2], [#allocation5], [#allocation6], %s42, 0
    %s58 = scalar_lea.hbm %s0, 288
    %s59 = scalar_lea.hbm %s1, 32
    %s61 = sshll.u32 1, 14
    %s62 = sxor.u32 4294967295, %s61
    %s65 = sshll.u32 3, 24
    %s66 = sxor.u32 4294967295, %s65
    %s67 = sand.u32 0, %s66
    %s69 = sor.u32 %s67, 0
    %72 = sst [smem:[#allocation8]] 512
    %s73 = scalar_lea.smem [#allocation8], 1
    %74 = sst [smem:[%s73]] 128
    %s75 = scalar_lea.smem [#allocation8], 2
    %76 = sst [smem:[%s75]] 2
    %s77 = scalar_lea.smem [#allocation8], 3
    %78 = sst [smem:[%s77]] 128
    %s79 = scalar_lea.smem [#allocation8], 4
    %80 = sst [smem:[%s79]] 64
    %s81 = scalar_lea.smem [#allocation8], 5
    %82 = sst [smem:[%s81]] 1
    %84 = dma.general %s58, 96, %s59, [#allocation2], [#allocation7], [#allocation8], %s69, 0
    %s85 = scalar_lea.hbm %s0, 368
    %s86 = scalar_lea.hbm %s1, 48
    %s88 = sshll.u32 1, 14
    %s89 = sxor.u32 4294967295, %s88
    %s92 = sshll.u32 3, 24
    %s93 = sxor.u32 4294967295, %s92
    %s94 = sand.u32 0, %s93
    %s96 = sor.u32 %s94, 0
    %99 = sst [smem:[#allocation10]] 512
    %s100 = scalar_lea.smem [#allocation10], 1
    %101 = sst [smem:[%s100]] 128
    %s102 = scalar_lea.smem [#allocation10], 2
    %103 = sst [smem:[%s102]] 2
    %s104 = scalar_lea.smem [#allocation10], 3
    %105 = sst [smem:[%s104]] 128
    %s106 = scalar_lea.smem [#allocation10], 4
    %107 = sst [smem:[%s106]] 64
    %s108 = scalar_lea.smem [#allocation10], 5
    %109 = sst [smem:[%s108]] 1
    %111 = dma.general %s85, 96, %s86, [#allocation2], [#allocation9], [#allocation10], %s96, 0
    %s112 = smul.u32 3, 1
    %s113 = smul.u32 %s112, 2
    %s114 = sshll.u32 %s113, 4
    %115 = dma.done [#allocation2], %s114
    %s116 = sshll.u32 %s113, 4
    %117 = dma.done [#allocation2], %s116
    %s118 = sshll.u32 %s113, 4
    %119 = dma.done [#allocation2], %s118
    %s120 = sshll.u32 %s113, 4
    %121 = dma.done [#allocation2], %s120
  %122 = vsyncmov [#allocation2]
  %s123 = vpop.sfrf %122
  %p124 = scmp.eq.s32.totalorder %s123, 0
  %p125 = pneg %p124
  %127 = shalt.err (%p125)

</llo_original>
